<compile_context>
chip_gen: v7x
topology: tpu7x:2x2x1
jax: 0.10.0
libtpu: 0.0.40
codegen_flags: <defaults>
</compile_context>

<pallas_src>
import functools

import jax
import jax.numpy as jnp
from jax.experimental import pallas as pl
from jax.experimental.pallas import tpu as pltpu


def _round_up(v, m):
    return ((v + m - 1) // m) * m


def _device_kind():
    try:
        return jax.devices()[0].device_kind.lower()
    except Exception:
        return ""


# ---------- single-pass kernel: whole spatial row resident in VMEM -----------

def _simam_kernel(x_ref, o_ref, *, inv_s, c1h, c2h, s_true, s_block,
                  low_precision):
    xin = x_ref[...]
    cdt = xin.dtype if low_precision else jnp.float32
    x = xin.astype(cdt)

    masked = s_block != s_true
    if masked:
        # One lane mask zeroes the pad lanes for BOTH reductions (OOB lanes of
        # a partial block hold undefined data, not zeros).
        lane = jax.lax.broadcasted_iota(jnp.int32, x.shape, 1)
        x = jnp.where(lane < s_true, x, 0.0)

    # Row statistics always accumulate in f32.
    mu32 = jnp.sum(x.astype(jnp.float32), axis=-1, keepdims=True) * inv_s
    mu = mu32.astype(cdt)
    d = x - mu
    d2 = d * d
    s32 = jnp.sum(d2.astype(jnp.float32), axis=-1, keepdims=True)
    if masked:
        # Each zeroed pad lane contributed mu^2 to the sum; remove it
        # algebraically instead of paying a second jnp.where pass.
        s32 = s32 - float(s_block - s_true) * (mu32 * mu32)

    # y/2 = d2 / (8*(s/n + e_lambda)) + 0.25 ; sigmoid(y) = 0.5*(1 + tanh(y/2))
    inv_den = pl.reciprocal(s32 * c1h + c2h).astype(cdt)
    y_half = d2 * inv_den + 0.25
    o_ref[...] = (x * (jnp.tanh(y_half) * 0.5 + 0.5)).astype(o_ref.dtype)


# ---------- two-pass kernels: chunked shifted reduction for large S ----------

def _stats_kernel(x_ref, mu_ref, s_ref, shift_ref, acc1_ref, acc2_ref, *,
                  inv_s, s_true, tile_s, nk, chunk0_inv):
    k = pl.program_id(1)
    has_tail = (nk * tile_s) != s_true

    x = x_ref[...].astype(jnp.float32)

    def tail_mask():
        lane = jax.lax.broadcasted_iota(jnp.int32, x.shape, 1) + k * tile_s
        return lane < s_true

    @pl.when(k == 0)
    def _():
        # Shift K = mean of chunk 0 (any K is exact algebraically; a near-mean
        # K avoids catastrophic cancellation in the variance).
        if has_tail and nk == 1:
            x0 = jnp.where(tail_mask(), x, 0.0)
        else:
            x0 = x
        shift_ref[...] = jnp.sum(x0, axis=-1, keepdims=True) * chunk0_inv
        acc1_ref[...] = jnp.zeros_like(acc1_ref)
        acc2_ref[...] = jnp.zeros_like(acc2_ref)

    def accumulate(dx):
        acc1_ref[...] += jnp.sum(dx, axis=-1, keepdims=True)
        acc2_ref[...] += jnp.sum(dx * dx, axis=-1, keepdims=True)

    if has_tail:
        # Only the tail chunk pays for the lane mask.
        @pl.when(k == nk - 1)
        def _():
            accumulate(jnp.where(tail_mask(), x - shift_ref[...], 0.0))

        @pl.when(k != nk - 1)
        def _():
            accumulate(x - shift_ref[...])
    else:
        accumulate(x - shift_ref[...])

    @pl.when(k == nk - 1)
    def _():
        a1 = acc1_ref[...]
        mu_ref[...] = shift_ref[...] + a1 * inv_s
        # sum((x-mu)^2) = sum((x-K)^2) - (sum(x-K))^2 / S
        s_ref[...] = acc2_ref[...] - (a1 * a1) * inv_s


def _epilogue_kernel(mu_ref, s_ref, x_ref, o_ref, *, c1h, c2h, low_precision):
    xin = x_ref[...]
    cdt = xin.dtype if low_precision else jnp.float32
    x = xin.astype(cdt)
    mu = mu_ref[...].astype(cdt)
    inv_den = pl.reciprocal(s_ref[...] * c1h + c2h).astype(cdt)
    d = x - mu
    y_half = (d * d) * inv_den + 0.25
    o_ref[...] = (x * (jnp.tanh(y_half) * 0.5 + 0.5)).astype(o_ref.dtype)


# ---------------------------------- wrapper ----------------------------------

def simam_3d(x, e_lambda=1e-4, _block_cap_bytes=None):
    """SimAM 3D attention. x: (b, c, d, h, w) -> x * sigmoid(y)."""
    b, c, d, h, w = x.shape
    rows = b * c
    s_true = d * h * w
    # Guard: PyTorch divides by n = d*h*w - 1, which is 0 (NaN output) when the
    # spatial size is 1; clamp so tracing never hits a Python ZeroDivisionError.
    n = max(s_true - 1, 1)

    inv_s = 1.0 / float(s_true)
    # Folded constants: y/2 = d2 / (s*(8/n) + 8*e_lambda) + 0.25
    c1h = 8.0 / float(n)
    c2h = 8.0 * float(e_lambda)

    kind = _device_kind()
    is_v7 = "v7" in kind
    is_v5 = "v5" in kind
    vmem_limit = (48 if is_v7 else 64) * 1024 * 1024   # v7x: 64 MiB/TC physical
    min_steps = 8 if is_v7 else 4                      # >=4 steps per TensorCore

    itemsize = jnp.dtype(x.dtype).itemsize
    low_precision = (x.dtype == jnp.bfloat16) and not is_v5   # v5e: no bf16 VPU
    row_align = 16 if (low_precision and itemsize == 2) else 8

    block_cap = (_block_cap_bytes if _block_cap_bytes is not None
                 else vmem_limit // 10)

    s_block = _round_up(s_true, 128)   # lane-dense block; tail masked in-kernel
    x2d = x.reshape(rows, s_true)      # free reshape, no copy

    compiler = functools.partial(pltpu.CompilerParams,
                                 vmem_limit_bytes=vmem_limit)

    if row_align * s_block * itemsize <= block_cap:
        # ---- single pass: whole spatial extent in one block per row tile ----
        row_bytes = s_block * itemsize
        target = min(block_cap, 4 * 1024 * 1024)          # keep blocks ~1-4 MiB
        fit_rows = max(row_align, (target // row_bytes) // row_align * row_align)
        steps_cap = max(row_align, _round_up(pl.cdiv(rows, min_steps), row_align))
        tile_rows = min(fit_rows, steps_cap, _round_up(rows, row_align))

        kernel = functools.partial(
            _simam_kernel, inv_s=inv_s, c1h=c1h, c2h=c2h,
            s_true=s_true, s_block=s_block, low_precision=low_precision)
        out2d = pl.pallas_call(
            kernel,
            out_shape=jax.ShapeDtypeStruct((rows, s_true), x.dtype),
            grid=(pl.cdiv(rows, tile_rows),),
            in_specs=[pl.BlockSpec((tile_rows, s_block), lambda i: (i, 0))],
            out_specs=pl.BlockSpec((tile_rows, s_block), lambda i: (i, 0)),
            compiler_params=compiler(dimension_semantics=("parallel",)),
        )(x2d)
    else:
        # ---- two passes: chunked per-row stats, then elementwise epilogue ----
        tp_cap = min(block_cap, 2 * 1024 * 1024)
        lane_budget = max(128, (tp_cap // (row_align * itemsize)) // 128 * 128)
        tile_s = min(s_block, 16384, lane_budget)   # big contiguous DMA segments
        tile_rows = max(row_align,
                        (tp_cap // (tile_s * itemsize)) // row_align * row_align)
        tile_rows = min(tile_rows, _round_up(rows, row_align))
        grid = (pl.cdiv(rows, tile_rows), pl.cdiv(s_true, tile_s))
        nk = grid[1]
        chunk0_inv = 1.0 / float(min(tile_s, s_true))

        x_spec = pl.BlockSpec((tile_rows, tile_s), lambda i, k: (i, k))
        stat_spec = pl.BlockSpec((tile_rows, 1), lambda i, k: (i, 0))

        stats = functools.partial(
            _stats_kernel, inv_s=inv_s, s_true=s_true, tile_s=tile_s, nk=nk,
            chunk0_inv=chunk0_inv)
        mu, svar = pl.pallas_call(
            stats,
            out_shape=(jax.ShapeDtypeStruct((rows, 1), jnp.float32),
                       jax.ShapeDtypeStruct((rows, 1), jnp.float32)),
            grid=grid,
            in_specs=[x_spec],
            out_specs=(stat_spec, stat_spec),
            scratch_shapes=[pltpu.VMEM((tile_rows, 1), jnp.float32),
                            pltpu.VMEM((tile_rows, 1), jnp.float32),
                            pltpu.VMEM((tile_rows, 1), jnp.float32)],
            compiler_params=compiler(
                dimension_semantics=("parallel", "arbitrary")),
        )(x2d)

        epi = functools.partial(_epilogue_kernel, c1h=c1h, c2h=c2h,
                                low_precision=low_precision)
        out2d = pl.pallas_call(
            epi,
            out_shape=jax.ShapeDtypeStruct((rows, s_true), x.dtype),
            grid=grid,
            in_specs=[stat_spec, stat_spec, x_spec],
            out_specs=x_spec,
            compiler_params=compiler(
                dimension_semantics=("parallel", "parallel")),
        )(mu, svar, x2d)

    return out2d.reshape(b, c, d, h, w)


def _simam_3d_ref(x, e_lambda=1e-4):
    # Pure-JAX reference mirroring the PyTorch forward (f32 compute).
    b, c, d, h, w = x.shape
    n = d * h * w - 1
    xf = x.astype(jnp.float32)
    mu = jnp.mean(xf, axis=(2, 3, 4), keepdims=True)
    d2 = (xf - mu) ** 2
    y = d2 / (4.0 * (jnp.sum(d2, axis=(2, 3, 4), keepdims=True) / n + e_lambda)) + 0.5
    return (xf * jax.nn.sigmoid(y)).astype(x.dtype)


if __name__ == "__main__":
    key = jax.random.PRNGKey(0)
    k1, k2 = jax.random.split(key)

    # Test 1: aligned shapes, single-pass path.
    x = jax.random.normal(k1, (2, 4, 8, 8, 8), dtype=jnp.float32)
    out = jax.block_until_ready(simam_3d(x))
    ref = _simam_3d_ref(x)
    assert out.shape == x.shape and out.dtype == x.dtype
    assert jnp.allclose(out, ref, atol=2e-5, rtol=2e-5)

    # Test 2: odd row count + non-128-aligned spatial, forced two-pass
    # (chunked shifted-reduction) path via a tiny block cap.
    x2 = jax.random.normal(k2, (3, 3, 6, 7, 7), dtype=jnp.float32)
    out2 = jax.block_until_ready(simam_3d(x2, _block_cap_bytes=8 * 1024))
    assert jnp.allclose(out2, _simam_3d_ref(x2), atol=2e-5, rtol=2e-5)

    # Test 3: same ragged shape through the single-pass masked-tail path.
    out3 = jax.block_until_ready(simam_3d(x2))
    assert jnp.allclose(out3, _simam_3d_ref(x2), atol=2e-5, rtol=2e-5)

    # Test 4: bf16 input (bf16 elementwise epilogue on v6e/v7x, f32 on v5e).
    xb = jax.random.normal(k1, (2, 4, 8, 8, 8), dtype=jnp.float32).astype(jnp.bfloat16)
    outb = jax.block_until_ready(simam_3d(xb))
    refb = _simam_3d_ref(xb).astype(jnp.float32)
    assert outb.dtype == jnp.bfloat16
    assert jnp.allclose(outb.astype(jnp.float32), refb, atol=5e-2, rtol=5e-2)

    print("KERNEL_OK")
</pallas_src>

<mosaic_0001>
module attributes {stable_mosaic.version = 11 : i64} {
  func.func @_simam_kernel(%arg0: i32, %arg1: memref<8x512xf32, #tpu.memory_space<vmem>>, %arg2: memref<8x512xf32, #tpu.memory_space<vmem>>) attributes {dimension_semantics = [#tpu.dimension_semantics<parallel>], iteration_bounds = array<i64: 1>, scalar_prefetch = 0 : i64, scratch_operands = 0 : i64, tpu.core_type = #tpu.core_type<tc>, window_params = [{transform_indices = @transform_0, window_bounds = array<i64: 8, 512>}, {transform_indices = @transform_1, window_bounds = array<i64: 8, 512>}]} {
    %c0 = arith.constant 0 : index
    %c0_0 = arith.constant 0 : index
    %0 = vector.load %arg1[%c0, %c0_0] : memref<8x512xf32, #tpu.memory_space<vmem>>, vector<8x512xf32>
    %cst = arith.constant dense<0.000000e+00> : vector<8xf32>
    %1 = vector.multi_reduction <add>, %0, %cst [1] : vector<8x512xf32> to vector<8xf32>
    %2 = vector.shape_cast %1 : vector<8xf32> to vector<8x1xf32>
    %cst_1 = arith.constant 0.001953125 : f32
    %3 = vector.broadcast %cst_1 : f32 to vector<8x1xf32>
    %4 = arith.mulf %2, %3 : vector<8x1xf32>
    %5 = vector.broadcast %4 : vector<8x1xf32> to vector<8x512xf32>
    %6 = arith.subf %0, %5 : vector<8x512xf32>
    %7 = arith.mulf %6, %6 : vector<8x512xf32>
    %cst_2 = arith.constant dense<0.000000e+00> : vector<8xf32>
    %8 = vector.multi_reduction <add>, %7, %cst_2 [1] : vector<8x512xf32> to vector<8xf32>
    %9 = vector.shape_cast %8 : vector<8xf32> to vector<8x1xf32>
    %cst_3 = arith.constant 0.0156555772 : f32
    %10 = vector.broadcast %cst_3 : f32 to vector<8x1xf32>
    %11 = arith.mulf %9, %10 : vector<8x1xf32>
    %cst_4 = arith.constant 8.000000e-04 : f32
    %12 = vector.broadcast %cst_4 : f32 to vector<8x1xf32>
    %13 = arith.addf %11, %12 : vector<8x1xf32>
    %14 = tpu.reciprocal %13 : vector<8x1xf32> -> vector<8x1xf32>
    %15 = vector.broadcast %14 : vector<8x1xf32> to vector<8x512xf32>
    %16 = arith.mulf %7, %15 : vector<8x512xf32>
    %cst_5 = arith.constant 2.500000e-01 : f32
    %17 = vector.broadcast %cst_5 : f32 to vector<8x512xf32>
    %18 = arith.addf %16, %17 : vector<8x512xf32>
    %19 = math.tanh %18 : vector<8x512xf32>
    %cst_6 = arith.constant 5.000000e-01 : f32
    %20 = vector.broadcast %cst_6 : f32 to vector<8x512xf32>
    %21 = arith.mulf %19, %20 : vector<8x512xf32>
    %cst_7 = arith.constant 5.000000e-01 : f32
    %22 = vector.broadcast %cst_7 : f32 to vector<8x512xf32>
    %23 = arith.addf %21, %22 : vector<8x512xf32>
    %24 = arith.mulf %0, %23 : vector<8x512xf32>
    %c0_8 = arith.constant 0 : index
    %c0_9 = arith.constant 0 : index
    %25 = vector.load %arg2[%c0_8, %c0_9] : memref<8x512xf32, #tpu.memory_space<vmem>>, vector<8x512xf32>
    tpu.vector_store %arg2[%c0_8, %c0_9], %24 {strides = array<i32>} : memref<8x512xf32, #tpu.memory_space<vmem>>, vector<8x512xf32>,
    return
  }
  func.func @transform_0(%arg0: i32) -> (i32, i32) {
    %c0_i32 = arith.constant 0 : i32
    %c0_i32_0 = arith.constant 0 : i32
    return %arg0, %c0_i32 : i32, i32
  }
  func.func @transform_1(%arg0: i32) -> (i32, i32) {
    %c0_i32 = arith.constant 0 : i32
    %c0_i32_0 = arith.constant 0 : i32
    return %arg0, %c0_i32 : i32, i32
  }
}

</mosaic_0001>

<llo_original>
// kernel: tpu_custom_call.1
$region0: #{tpu_custom_call.1}
  #allocation0 [shape = 'u32[]', space=smem, size = 0x4, offset = 0x4, fixed_abs, tag = 'smem constant byte address 0x4 - core index']
  #allocation1 [shape = 'u32[144,128]{1,0:T(1,128)}', space=vmem, size = 0x12000, scoped, tag = 'internal scratch']
  %s0 = inlined_call_operand.hbm [shape: f32[8,512], index: 0, kind: input, shape index: {}]
  %s1 = inlined_call_operand.hbm [shape: f32[8,512], index: 1, kind: output, shape index: {}]
  %s2 = sld [smem:[#allocation0]]
  $region18: #{tpu_custom_call.1} parent=0
    _
  %s4 = ssub.s32 1, %s2
  %s5 = scalar_select 0, %s4, %s2
  $region1: #{tpu_custom_call.1} parent=0
    #allocation2 [shape = 'u8[16384]{0}', space=vmem, size = 0x4000, scoped, tag = 'input window, operand 0, single buffered']
    #allocation3 [shape = 's32[1]{0}', space=sflag, size = 0x4, scoped, tag = 'scoped memory for tpu_custom_call.1']
    #allocation4 [shape = 's32[1]{0}', space=sflag, size = 0x4, scoped, tag = 'scoped memory for tpu_custom_call.1']
    #allocation5 [shape = 'u8[16384]{0}', space=vmem, size = 0x4000, scoped, tag = 'output window, operand 0, single buffered']
    %6 = vsyncpa [#allocation3], 0
    %7 = vsyncpa [#allocation4], 0
    // Predicated region
    $region2: #{tpu_custom_call.1} parent=1 // pred_check
      _
    $region3: #{tpu_custom_call.1} parent=1 // pred_check_branch
      %9 = sbr.rel (0) target = $region5
    $region4: #{tpu_custom_call.1} parent=1 // pred_region
      %s11 = ssub.s32 512, 512
      %12 = vsyncadd [#allocation3], %s11
      %s14 = sshll.u32 [#allocation2], 4
      %s15 = int_to_ptr.vmem [resolvable:$true] %s14
      %17 = dma.hbm_to_vmem [thread:$0]  %s0, 512, %s15, [#allocation3]
    $region5: #{tpu_custom_call.1} parent=1 // pred_fallthru
      _
    // Predicated region
    $region6: #{tpu_custom_call.1} parent=1 // pred_check
      _
    $region7: #{tpu_custom_call.1} parent=1 // pred_check_branch
      %19 = sbr.rel (0) target = $region9
    $region8: #{tpu_custom_call.1} parent=1 // pred_region
      %20 = dma.done [#allocation3], 512
    $region9: #{tpu_custom_call.1} parent=1 // pred_fallthru
      _
    %v21 = vld [vmem:[#allocation2] sm:$0xff]
    %v22 = vld [vmem:[#allocation2 + $0x8] sm:$0xff]
    %v23 = vld [vmem:[#allocation2 + $0x10] sm:$0xff]
    %v24 = vld [vmem:[#allocation2 + $0x18] sm:$0xff]
    %v25 = vadd.f32 %v21, %v22
    %v26 = vadd.f32 %v25, %v23
    %v27 = vadd.f32 %v26, %v24
    %28 = vadd.xlane.f32.xlu0 %v27
    %v29 = vpop.xlane.xlu0 %28
    %v30 = vmul.f32 %v29, 0.001953125
    %v31 = vsub.f32 %v21, %v30
    %v32 = vsub.f32 %v22, %v30
    %v33 = vsub.f32 %v23, %v30
    %v34 = vsub.f32 %v24, %v30
    %v35 = vmul.f32 %v31, %v31
    %v36 = vmul.f32 %v32, %v32
    %v37 = vmul.f32 %v33, %v33
    %v38 = vmul.f32 %v34, %v34
    %v39 = vadd.f32 %v35, %v36
    %v40 = vadd.f32 %v39, %v37
    %v41 = vadd.f32 %v40, %v38
    %42 = vadd.xlane.f32.xlu0 %v41
    %v43 = vpop.xlane.xlu0 %42
    %v44 = vmul.f32 %v43, 0.015655577
    %v45 = vadd.f32 %v44, 0.0008
    %v46 = vrcp.pop %v45
    %v47 = vmul.f32 %v35, %v46
    %v48 = vmul.f32 %v36, %v46
    %v49 = vmul.f32 %v37, %v46
    %v50 = vmul.f32 %v38, %v46
    %v51 = vadd.f32 %v47, 0.25
    %v52 = vadd.f32 %v48, 0.25
    %v53 = vadd.f32 %v49, 0.25
    %v54 = vadd.f32 %v50, 0.25
    %v55 = vtanh.pop %v51
    %v56 = vtanh.pop %v52
    %v57 = vtanh.pop %v53
    %v58 = vtanh.pop %v54
    %v59 = vmul.f32 %v55, 0.5
    %v60 = vmul.f32 %v56, 0.5
    %v61 = vmul.f32 %v57, 0.5
    %v62 = vmul.f32 %v58, 0.5
    %v63 = vadd.f32 %v59, 0.5
    %v64 = vadd.f32 %v60, 0.5
    %v65 = vadd.f32 %v61, 0.5
    %v66 = vadd.f32 %v62, 0.5
    %v67 = vmul.f32 %v21, %v63
    %v68 = vmul.f32 %v22, %v64
    %v69 = vmul.f32 %v23, %v65
    %v70 = vmul.f32 %v24, %v66
    %71 = vst [vmem:[#allocation5] sm:$0xff] %v67
    %72 = vst [vmem:[#allocation5 + $0x8] sm:$0xff] %v68
    %73 = vst [vmem:[#allocation5 + $0x10] sm:$0xff] %v69
    %74 = vst [vmem:[#allocation5 + $0x18] sm:$0xff] %v70
    // Predicated region
    $region10: #{tpu_custom_call.1} parent=1 // pred_check
      _
    $region11: #{tpu_custom_call.1} parent=1 // pred_check_branch
      %76 = sbr.rel (0) target = $region13
    $region12: #{tpu_custom_call.1} parent=1 // pred_region
      %s78 = ssub.s32 512, 512
      %79 = vsyncadd [#allocation4], %s78
      %s81 = sshll.u32 [#allocation5], 4
      %s82 = int_to_ptr.vmem [resolvable:$true] %s81
      %84 = dma.vmem_to_hbm [thread:$0]  %s82, 512, %s1, [#allocation4]
    $region13: #{tpu_custom_call.1} parent=1 // pred_fallthru
      _
    // Predicated region
    $region14: #{tpu_custom_call.1} parent=1 // pred_check
      _
    $region15: #{tpu_custom_call.1} parent=1 // pred_check_branch
      %86 = sbr.rel (0) target = $region17
    $region16: #{tpu_custom_call.1} parent=1 // pred_region
      %87 = dma.done [#allocation4], 512
    $region17: #{tpu_custom_call.1} parent=1 // pred_fallthru
      _
    %88 = vsyncpa [#allocation3], 1
    %89 = vsyncpa [#allocation4], 1

</llo_original>
